<compile_context>
chip_gen: v7x
topology: tpu7x:2x2x1
jax: 0.10.0
libtpu: 0.0.40
codegen_flags: <defaults>
</compile_context>

<pallas_src>
import jax
import jax.numpy as jnp
from jax.experimental import pallas as pl
from jax.experimental.pallas import tpu as pltpu

NEG_SLOPE = 0.01  # F.leaky_relu default negative_slope


def _leaky_relu(x):
    return jnp.where(x > 0, x, NEG_SLOPE * x)


def _round_up(x, m):
    return ((x + m - 1) // m) * m


def _nbytes(a):
    return int(a.size) * a.dtype.itemsize


def _make_kernel(out_size, head_num):
    """Fused: 2 leaky_relu hidden layers + last_fc + softmax(out_size) + softmax(head groups)."""
    inv_h = 1.0 / float(head_num)

    def kernel(x_ref, w0_ref, b0_ref, w1_ref, b1_ref, wl_ref, bl_ref, out_ref):
        # hidden layer 0 (bf16 operands on the MXU, f32 accumulation)
        h = jnp.dot(x_ref[...], w0_ref[...], preferred_element_type=jnp.float32) + b0_ref[...]
        h = _leaky_relu(h)
        # hidden layer 1
        h = jnp.dot(h.astype(w1_ref.dtype), w1_ref[...], preferred_element_type=jnp.float32) + b1_ref[...]
        h = _leaky_relu(h)
        # last_fc
        pre = jnp.dot(h.astype(wl_ref.dtype), wl_ref[...], preferred_element_type=jnp.float32) + bl_ref[...]

        # softmax #1 over the full output dimension (SoftmaxMLP)
        m1 = jnp.max(pre, axis=-1, keepdims=True)
        e1 = jnp.exp(pre - m1)
        p1 = e1 * pl.reciprocal(jnp.sum(e1, axis=-1, keepdims=True), approx=True)

        # softmax #2 over contiguous groups of head_num lanes (== softmax of view(-1, head_num)).
        # p1 in (0, 1] so exp() cannot overflow -> max-subtraction safely dropped (shift-invariant).
        e2 = jnp.exp(p1)

        # Block-diagonal group mask built in-kernel (no HBM operand, no resident VMEM buffer):
        # gmask[i, j] = 1 iff floor(i/head_num) == floor(j/head_num).  Floating floor of
        # (i + 0.5)/head_num is used instead of vector integer division (not a native VPU op);
        # the 0.5 offset keeps it exact far below f32 rounding error for any realistic out_size.
        ri = jax.lax.broadcasted_iota(jnp.int32, (out_size, out_size), 0).astype(jnp.float32)
        ci = jax.lax.broadcasted_iota(jnp.int32, (out_size, out_size), 1).astype(jnp.float32)
        gmask = (jnp.floor((ri + 0.5) * inv_h) == jnp.floor((ci + 0.5) * inv_h)).astype(jnp.bfloat16)

        # (e2 @ gmask)[:, j] = sum of e2 over the group containing j, i.e. the per-group sums are
        # already broadcast back to every lane -- no in-kernel reshape needed.  bf16 operands ->
        # single-pass MXU; denominator error ~2^-9 relative, far under the output tolerance.
        gsum = jnp.dot(e2.astype(jnp.bfloat16), gmask, preferred_element_type=jnp.float32)
        out_ref[...] = (e2 * pl.reciprocal(gsum, approx=True)).astype(out_ref.dtype)

    return kernel


def multi_mlp_forward(x, params, head_num, *, tile_m_max=512, matmul_dtype=jnp.bfloat16):
    w0, b0, w1, b1, wl, bl = params
    batch, input_size = x.shape
    h0, h1 = w0.shape[1], w1.shape[1]
    out_size = wl.shape[1]
    assert out_size % head_num == 0, "head_num must divide output_size for view(-1, head_num)"
    assert tile_m_max % 8 == 0

    # bf16 MXU operands (f32 accumulation happens inside the kernel); biases stay f32.
    xm = x.astype(matmul_dtype)
    w0m, w1m, wlm = (w.astype(matmul_dtype) for w in (w0, w1, wl))
    consts = (w0m, b0, w1m, b1, wlm, bl)

    # batch tile: multiple of 8; aim for >=2 grid steps so 2-TC chips (v7x/v4/v5p) use both cores.
    if batch > tile_m_max:
        tile_m = tile_m_max
    elif batch >= 16:
        tile_m = min(tile_m_max, _round_up(pl.cdiv(batch, 2), 8))
    else:
        tile_m = batch  # tiny batch: single tile (block == full dim), no extra step overhead
    grid = (pl.cdiv(batch, tile_m),)

    # Generation-aware VMEM budget: worst-case buffer bytes (everything double-buffered) plus
    # headroom for f32 intermediates, clamped against the chip's physical VMEM.
    needed = 2 * sum(_nbytes(a) for a in consts)                  # resident operands (<=2 buffers)
    needed += 2 * tile_m * input_size * xm.dtype.itemsize         # x tile, double-buffered
    needed += 2 * tile_m * out_size * 4                           # out tile, double-buffered
    needed += 6 * tile_m * max(h0, h1, out_size) * 4              # live f32 intermediates
    needed += out_size * out_size * 4                             # in-kernel group mask
    try:
        physical_vmem = int(pltpu.get_tpu_info().vmem_capacity_bytes)
    except Exception:  # conservative default: smallest per-core VMEM across generations (v7x)
        physical_vmem = 64 * 1024 * 1024
    vmem_limit = min(max(int(needed * 1.5) + (8 << 20), 32 << 20), int(physical_vmem * 0.85))

    # TODO(synk): for hidden sizes too large to stay VMEM-resident, add a K-reduction grid axis
    # ("arbitrary") with an f32 accumulator scratch instead of whole-weight residency.

    cost = pl.CostEstimate(
        flops=2 * batch * (input_size * h0 + h0 * h1 + h1 * out_size + out_size * out_size),
        transcendentals=2 * batch * out_size,                     # two exp passes over the logits
        bytes_accessed=_nbytes(xm) + sum(_nbytes(a) for a in consts) + batch * out_size * 4,
    )

    kernel = _make_kernel(out_size, head_num)
    out_shape = jax.ShapeDtypeStruct((batch, out_size), jnp.float32)

    def run(single_buffer_consts):
        def const_spec(a):
            # Grid-invariant operand: VMEM-resident across all steps.  Constant index_map means
            # double buffering buys nothing -> request a single buffer (halves resident VMEM).
            if single_buffer_consts:
                return pl.BlockSpec(a.shape, lambda i: (0, 0), pipeline_mode=pl.Buffered(1))
            return pl.BlockSpec(a.shape, lambda i: (0, 0))

        return pl.pallas_call(
            kernel,
            out_shape=out_shape,
            grid=grid,
            in_specs=[pl.BlockSpec((tile_m, input_size), lambda i: (i, 0))]   # x: tiled on batch
                     + [const_spec(a) for a in consts],
            out_specs=pl.BlockSpec((tile_m, out_size), lambda i: (i, 0)),
            compiler_params=pltpu.CompilerParams(
                dimension_semantics=("parallel",),    # shard batch axis across TCs (megacore)
                vmem_limit_bytes=vmem_limit,
            ),
            cost_estimate=cost,
        )(xm, *consts)

    try:
        probs = run(True)
    except Exception:
        # Fallback for jax builds whose TPU lowering rejects pipeline_mode=pl.Buffered(1);
        # identical kernel, default (double) buffering for the resident operands.
        probs = run(False)

    # matches torch `output.view(-1, self.head_num)`: contiguous row-major reshape, done OUTSIDE
    # the kernel so the kernel store stays a plain (batch, out_size) slab.
    return probs.reshape(-1, head_num)


def init_params(key, input_size, hidden_sizes, output_size, init_w=0.003, b_init_value=0.1):
    """Mirrors MLP.__init__: fanin_init (uniform +/- 1/sqrt(fan_in)) for hidden weights,
    bias=0.1, last_fc weight & bias ~ uniform(-init_w, init_w).  Weights stored (in, out)."""
    params = []
    in_size = input_size
    for h in hidden_sizes:
        key, k = jax.random.split(key)
        bound = 1.0 / float(in_size) ** 0.5
        w = jax.random.uniform(k, (in_size, h), jnp.float32, -bound, bound)
        b = jnp.full((1, h), b_init_value, jnp.float32)
        params += [w, b]
        in_size = h
    key, k1, k2 = jax.random.split(key, 3)
    wl = jax.random.uniform(k1, (in_size, output_size), jnp.float32, -init_w, init_w)
    bl = jax.random.uniform(k2, (1, output_size), jnp.float32, -init_w, init_w)
    params += [wl, bl]
    return params


def reference_forward(x, params, head_num):
    """Pure-JAX f32 reference of MultiMLP.forward (return_preactivation=False path)."""
    w0, b0, w1, b1, wl, bl = params
    h = _leaky_relu(x @ w0 + b0)
    h = _leaky_relu(h @ w1 + b1)
    pre = h @ wl + bl
    p = jax.nn.softmax(pre, axis=-1)
    p = p.reshape(-1, head_num)
    return jax.nn.softmax(p, axis=-1)


if __name__ == "__main__":
    # small shapes implied by the module: flat feature input, 2 hidden layers, multi-head softmax output
    batch = 8
    input_size = 32
    hidden_sizes = (32, 32)
    output_size = 16
    head_num = 4  # must divide output_size so view(-1, head_num) is well formed

    key = jax.random.PRNGKey(0)
    key, kx = jax.random.split(key)
    x = jax.random.normal(kx, (batch, input_size), jnp.float32)

    params = init_params(key, input_size, hidden_sizes, output_size)

    out = multi_mlp_forward(x, params, head_num)
    out = jax.block_until_ready(out)

    ref = reference_forward(x, params, head_num)
    assert out.shape == (batch * output_size // head_num, head_num)
    assert bool(jnp.all(jnp.isfinite(out)))
    # bf16 MXU operands + approx reciprocals => compare with a modest (still meaningful) tolerance
    assert jnp.allclose(out, ref, atol=5e-3, rtol=0.0), "mismatch vs f32 reference"
    # each row is a probability distribution over head_num entries
    assert jnp.allclose(jnp.sum(out, axis=-1), 1.0, atol=1e-2), "rows do not sum to 1"

    print("KERNEL_OK")
</pallas_src>

<mosaic_0001>
module attributes {stable_mosaic.version = 11 : i64} {
  func.func @kernel(%arg0: i32, %arg1: memref<8x32xbf16, #tpu.memory_space<vmem>>, %arg2: memref<32x32xbf16, #tpu.memory_space<vmem>>, %arg3: memref<1x32xf32, #tpu.memory_space<vmem>>, %arg4: memref<32x32xbf16, #tpu.memory_space<vmem>>, %arg5: memref<1x32xf32, #tpu.memory_space<vmem>>, %arg6: memref<32x16xbf16, #tpu.memory_space<vmem>>, %arg7: memref<1x16xf32, #tpu.memory_space<vmem>>, %arg8: memref<8x16xf32, #tpu.memory_space<vmem>>) attributes {dimension_semantics = [#tpu.dimension_semantics<parallel>], iteration_bounds = array<i64: 1>, scalar_prefetch = 0 : i64, scratch_operands = 0 : i64, tpu.core_type = #tpu.core_type<tc>, window_params = [{transform_indices = @transform_0, window_bounds = array<i64: 8, 32>}, {pipeline_mode = #tpu.pipeline_mode<synchronous>, transform_indices = @transform_1, window_bounds = array<i64: 32, 32>}, {pipeline_mode = #tpu.pipeline_mode<synchronous>, transform_indices = @transform_2, window_bounds = array<i64: 1, 32>}, {pipeline_mode = #tpu.pipeline_mode<synchronous>, transform_indices = @transform_3, window_bounds = array<i64: 32, 32>}, {pipeline_mode = #tpu.pipeline_mode<synchronous>, transform_indices = @transform_4, window_bounds = array<i64: 1, 32>}, {pipeline_mode = #tpu.pipeline_mode<synchronous>, transform_indices = @transform_5, window_bounds = array<i64: 32, 16>}, {pipeline_mode = #tpu.pipeline_mode<synchronous>, transform_indices = @transform_6, window_bounds = array<i64: 1, 16>}, {transform_indices = @transform_7, window_bounds = array<i64: 8, 16>}]} {
    %c0 = arith.constant 0 : index
    %c0_0 = arith.constant 0 : index
    %0 = vector.load %arg1[%c0, %c0_0] : memref<8x32xbf16, #tpu.memory_space<vmem>>, vector<8x32xbf16>
    %c0_1 = arith.constant 0 : index
    %c0_2 = arith.constant 0 : index
    %1 = vector.load %arg2[%c0_1, %c0_2] : memref<32x32xbf16, #tpu.memory_space<vmem>>, vector<32x32xbf16>
    %cst = arith.constant dense<0.000000e+00> : vector<8x32xf32>
    %2 = tpu.matmul %0, %1, %cst {dimension_numbers = #tpu.dot_dimension_numbers<[1], [0], [0], [1], [0, 0, 1, 1], [], []>} : vector<8x32xbf16>, vector<32x32xbf16>, vector<8x32xf32> -> vector<8x32xf32>
    %c0_3 = arith.constant 0 : index
    %c0_4 = arith.constant 0 : index
    %3 = vector.load %arg3[%c0_3, %c0_4] : memref<1x32xf32, #tpu.memory_space<vmem>>, vector<1x32xf32>
    %4 = vector.broadcast %3 : vector<1x32xf32> to vector<8x32xf32>
    %5 = arith.addf %2, %4 : vector<8x32xf32>
    %cst_5 = arith.constant 0.000000e+00 : f32
    %6 = vector.broadcast %cst_5 : f32 to vector<8x32xf32>
    %7 = arith.cmpf ogt, %5, %6 : vector<8x32xf32>
    %cst_6 = arith.constant 0.00999999977 : f32
    %8 = vector.broadcast %cst_6 : f32 to vector<8x32xf32>
    %9 = arith.mulf %8, %5 : vector<8x32xf32>
    %10 = arith.select %7, %5, %9 : vector<8x32xi1>, vector<8x32xf32>
    %11 = arith.truncf %10 : vector<8x32xf32> to vector<8x32xbf16>
    %c0_7 = arith.constant 0 : index
    %c0_8 = arith.constant 0 : index
    %12 = vector.load %arg4[%c0_7, %c0_8] : memref<32x32xbf16, #tpu.memory_space<vmem>>, vector<32x32xbf16>
    %cst_9 = arith.constant dense<0.000000e+00> : vector<8x32xf32>
    %13 = tpu.matmul %11, %12, %cst_9 {dimension_numbers = #tpu.dot_dimension_numbers<[1], [0], [0], [1], [0, 0, 1, 1], [], []>} : vector<8x32xbf16>, vector<32x32xbf16>, vector<8x32xf32> -> vector<8x32xf32>
    %c0_10 = arith.constant 0 : index
    %c0_11 = arith.constant 0 : index
    %14 = vector.load %arg5[%c0_10, %c0_11] : memref<1x32xf32, #tpu.memory_space<vmem>>, vector<1x32xf32>
    %15 = vector.broadcast %14 : vector<1x32xf32> to vector<8x32xf32>
    %16 = arith.addf %13, %15 : vector<8x32xf32>
    %cst_12 = arith.constant 0.000000e+00 : f32
    %17 = vector.broadcast %cst_12 : f32 to vector<8x32xf32>
    %18 = arith.cmpf ogt, %16, %17 : vector<8x32xf32>
    %cst_13 = arith.constant 0.00999999977 : f32
    %19 = vector.broadcast %cst_13 : f32 to vector<8x32xf32>
    %20 = arith.mulf %19, %16 : vector<8x32xf32>
    %21 = arith.select %18, %16, %20 : vector<8x32xi1>, vector<8x32xf32>
    %22 = arith.truncf %21 : vector<8x32xf32> to vector<8x32xbf16>
    %c0_14 = arith.constant 0 : index
    %c0_15 = arith.constant 0 : index
    %23 = vector.load %arg6[%c0_14, %c0_15] : memref<32x16xbf16, #tpu.memory_space<vmem>>, vector<32x16xbf16>
    %cst_16 = arith.constant dense<0.000000e+00> : vector<8x16xf32>
    %24 = tpu.matmul %22, %23, %cst_16 {dimension_numbers = #tpu.dot_dimension_numbers<[1], [0], [0], [1], [0, 0, 1, 1], [], []>} : vector<8x32xbf16>, vector<32x16xbf16>, vector<8x16xf32> -> vector<8x16xf32>
    %c0_17 = arith.constant 0 : index
    %c0_18 = arith.constant 0 : index
    %25 = vector.load %arg7[%c0_17, %c0_18] : memref<1x16xf32, #tpu.memory_space<vmem>>, vector<1x16xf32>
    %26 = vector.broadcast %25 : vector<1x16xf32> to vector<8x16xf32>
    %27 = arith.addf %24, %26 : vector<8x16xf32>
    %cst_19 = arith.constant dense<0xFF800000> : vector<8xf32>
    %28 = vector.multi_reduction <maximumf>, %27, %cst_19 [1] : vector<8x16xf32> to vector<8xf32>
    %29 = vector.shape_cast %28 : vector<8xf32> to vector<8x1xf32>
    %30 = vector.broadcast %29 : vector<8x1xf32> to vector<8x16xf32>
    %31 = arith.subf %27, %30 : vector<8x16xf32>
    %32 = math.exp %31 : vector<8x16xf32>
    %cst_20 = arith.constant dense<0.000000e+00> : vector<8xf32>
    %33 = vector.multi_reduction <add>, %32, %cst_20 [1] : vector<8x16xf32> to vector<8xf32>
    %34 = vector.shape_cast %33 : vector<8xf32> to vector<8x1xf32>
    %35 = tpu.reciprocal %34 {approx = true} : vector<8x1xf32> -> vector<8x1xf32>
    %36 = vector.broadcast %35 : vector<8x1xf32> to vector<8x16xf32>
    %37 = arith.mulf %32, %36 : vector<8x16xf32>
    %38 = math.exp %37 : vector<8x16xf32>
    %39 = tpu.iota {dimensions = array<i32: 0>} : vector<16x16xi32>
    %40 = arith.sitofp %39 : vector<16x16xi32> to vector<16x16xf32>
    %41 = tpu.iota {dimensions = array<i32: 1>} : vector<16x16xi32>
    %42 = arith.sitofp %41 : vector<16x16xi32> to vector<16x16xf32>
    %cst_21 = arith.constant 5.000000e-01 : f32
    %43 = vector.broadcast %cst_21 : f32 to vector<16x16xf32>
    %44 = arith.addf %40, %43 : vector<16x16xf32>
    %cst_22 = arith.constant 2.500000e-01 : f32
    %45 = vector.broadcast %cst_22 : f32 to vector<16x16xf32>
    %46 = arith.mulf %44, %45 : vector<16x16xf32>
    %47 = math.floor %46 : vector<16x16xf32>
    %cst_23 = arith.constant 5.000000e-01 : f32
    %48 = vector.broadcast %cst_23 : f32 to vector<16x16xf32>
    %49 = arith.addf %42, %48 : vector<16x16xf32>
    %cst_24 = arith.constant 2.500000e-01 : f32
    %50 = vector.broadcast %cst_24 : f32 to vector<16x16xf32>
    %51 = arith.mulf %49, %50 : vector<16x16xf32>
    %52 = math.floor %51 : vector<16x16xf32>
    %53 = arith.cmpf oeq, %47, %52 : vector<16x16xf32>
    %54 = arith.extui %53 : vector<16x16xi1> to vector<16x16xi32>
    %55 = arith.sitofp %54 : vector<16x16xi32> to vector<16x16xf32>
    %56 = arith.truncf %55 : vector<16x16xf32> to vector<16x16xbf16>
    %57 = arith.truncf %38 : vector<8x16xf32> to vector<8x16xbf16>
    %cst_25 = arith.constant dense<0.000000e+00> : vector<8x16xf32>
    %58 = tpu.matmul %57, %56, %cst_25 {dimension_numbers = #tpu.dot_dimension_numbers<[1], [0], [0], [1], [0, 0, 1, 1], [], []>} : vector<8x16xbf16>, vector<16x16xbf16>, vector<8x16xf32> -> vector<8x16xf32>
    %59 = tpu.reciprocal %58 {approx = true} : vector<8x16xf32> -> vector<8x16xf32>
    %60 = arith.mulf %38, %59 : vector<8x16xf32>
    %c0_26 = arith.constant 0 : index
    %c0_27 = arith.constant 0 : index
    %61 = vector.load %arg8[%c0_26, %c0_27] : memref<8x16xf32, #tpu.memory_space<vmem>>, vector<8x16xf32>
    tpu.vector_store %arg8[%c0_26, %c0_27], %60 {strides = array<i32>} : memref<8x16xf32, #tpu.memory_space<vmem>>, vector<8x16xf32>,
    return
  }
  func.func @transform_0(%arg0: i32) -> (i32, i32) {
    %c0_i32 = arith.constant 0 : i32
    %c0_i32_0 = arith.constant 0 : i32
    return %arg0, %c0_i32 : i32, i32
  }
  func.func @transform_1(%arg0: i32) -> (i32, i32) {
    %c0_i32 = arith.constant 0 : i32
    %c0_i32_0 = arith.constant 0 : i32
    %c0_i32_1 = arith.constant 0 : i32
    return %c0_i32, %c0_i32_0 : i32, i32
  }
  func.func @transform_2(%arg0: i32) -> (i32, i32) {
    %c0_i32 = arith.constant 0 : i32
    %c0_i32_0 = arith.constant 0 : i32
    %c0_i32_1 = arith.constant 0 : i32
    return %c0_i32, %c0_i32_0 : i32, i32
  }
  func.func @transform_3(%arg0: i32) -> (i32, i32) {
    %c0_i32 = arith.constant 0 : i32
    %c0_i32_0 = arith.constant 0 : i32
    %c0_i32_1 = arith.constant 0 : i32
    return %c0_i32, %c0_i32_0 : i32, i32
  }
  func.func @transform_4(%arg0: i32) -> (i32, i32) {
    %c0_i32 = arith.constant 0 : i32
    %c0_i32_0 = arith.constant 0 : i32
    %c0_i32_1 = arith.constant 0 : i32
    return %c0_i32, %c0_i32_0 : i32, i32
  }
  func.func @transform_5(%arg0: i32) -> (i32, i32) {
    %c0_i32 = arith.constant 0 : i32
    %c0_i32_0 = arith.constant 0 : i32
    %c0_i32_1 = arith.constant 0 : i32
    return %c0_i32, %c0_i32_0 : i32, i32
  }
  func.func @transform_6(%arg0: i32) -> (i32, i32) {
    %c0_i32 = arith.constant 0 : i32
    %c0_i32_0 = arith.constant 0 : i32
    %c0_i32_1 = arith.constant 0 : i32
    return %c0_i32, %c0_i32_0 : i32, i32
  }
  func.func @transform_7(%arg0: i32) -> (i32, i32) {
    %c0_i32 = arith.constant 0 : i32
    %c0_i32_0 = arith.constant 0 : i32
    return %arg0, %c0_i32 : i32, i32
  }
}

module attributes {stable_mosaic.version = 11 : i64} {
  func.func @kernel(%arg0: i32, %arg1: memref<8x32xbf16, #tpu.memory_space<vmem>>, %arg2: memref<32x32xbf16, #tpu.memory_space<vmem>>, %arg3: memref<1x32xf32, #tpu.memory_space<vmem>>, %arg4: memref<32x32xbf16, #tpu.memory_space<vmem>>, %arg5: memref<1x32xf32, #tpu.memory_space<vmem>>, %arg6: memref<32x16xbf16, #tpu.memory_space<vmem>>, %arg7: memref<1x16xf32, #tpu.memory_space<vmem>>, %arg8: memref<8x16xf32, #tpu.memory_space<vmem>>) attributes {dimension_semantics = [#tpu.dimension_semantics<parallel>], iteration_bounds = array<i64: 1>, scalar_prefetch = 0 : i64, scratch_operands = 0 : i64, tpu.core_type = #tpu.core_type<tc>, window_params = [{transform_indices = @transform_0, window_bounds = array<i64: 8, 32>}, {pipeline_mode = #tpu.pipeline_mode<synchronous>, transform_indices = @transform_1, window_bounds = array<i64: 32, 32>}, {pipeline_mode = #tpu.pipeline_mode<synchronous>, transform_indices = @transform_2, window_bounds = array<i64: 1, 32>}, {pipeline_mode = #tpu.pipeline_mode<synchronous>, transform_indices = @transform_3, window_bounds = array<i64: 32, 32>}, {pipeline_mode = #tpu.pipeline_mode<synchronous>, transform_indices = @transform_4, window_bounds = array<i64: 1, 32>}, {pipeline_mode = #tpu.pipeline_mode<synchronous>, transform_indices = @transform_5, window_bounds = array<i64: 32, 16>}, {pipeline_mode = #tpu.pipeline_mode<synchronous>, transform_indices = @transform_6, window_bounds = array<i64: 1, 16>}, {transform_indices = @transform_7, window_bounds = array<i64: 8, 16>}]} {
    %c0 = arith.constant 0 : index
    %c0_0 = arith.constant 0 : index
    %0 = vector.load %arg1[%c0, %c0_0] : memref<8x32xbf16, #tpu.memory_space<vmem>>, vector<8x32xbf16>
    %c0_1 = arith.constant 0 : index
    %c0_2 = arith.constant 0 : index
    %1 = vector.load %arg2[%c0_1, %c0_2] : memref<32x32xbf16, #tpu.memory_space<vmem>>, vector<32x32xbf16>
    %cst = arith.constant dense<0.000000e+00> : vector<8x32xf32>
    %2 = tpu.matmul %0, %1, %cst {dimension_numbers = #tpu.dot_dimension_numbers<[1], [0], [0], [1], [0, 0, 1, 1], [], []>} : vector<8x32xbf16>, vector<32x32xbf16>, vector<8x32xf32> -> vector<8x32xf32>
    %c0_3 = arith.constant 0 : index
    %c0_4 = arith.constant 0 : index
    %3 = vector.load %arg3[%c0_3, %c0_4] : memref<1x32xf32, #tpu.memory_space<vmem>>, vector<1x32xf32>
    %4 = vector.broadcast %3 : vector<1x32xf32> to vector<8x32xf32>
    %5 = arith.addf %2, %4 : vector<8x32xf32>
    %cst_5 = arith.constant 0.000000e+00 : f32
    %6 = vector.broadcast %cst_5 : f32 to vector<8x32xf32>
    %7 = arith.cmpf ogt, %5, %6 : vector<8x32xf32>
    %cst_6 = arith.constant 0.00999999977 : f32
    %8 = vector.broadcast %cst_6 : f32 to vector<8x32xf32>
    %9 = arith.mulf %8, %5 : vector<8x32xf32>
    %10 = arith.select %7, %5, %9 : vector<8x32xi1>, vector<8x32xf32>
    %11 = arith.truncf %10 : vector<8x32xf32> to vector<8x32xbf16>
    %c0_7 = arith.constant 0 : index
    %c0_8 = arith.constant 0 : index
    %12 = vector.load %arg4[%c0_7, %c0_8] : memref<32x32xbf16, #tpu.memory_space<vmem>>, vector<32x32xbf16>
    %cst_9 = arith.constant dense<0.000000e+00> : vector<8x32xf32>
    %13 = tpu.matmul %11, %12, %cst_9 {dimension_numbers = #tpu.dot_dimension_numbers<[1], [0], [0], [1], [0, 0, 1, 1], [], []>} : vector<8x32xbf16>, vector<32x32xbf16>, vector<8x32xf32> -> vector<8x32xf32>
    %c0_10 = arith.constant 0 : index
    %c0_11 = arith.constant 0 : index
    %14 = vector.load %arg5[%c0_10, %c0_11] : memref<1x32xf32, #tpu.memory_space<vmem>>, vector<1x32xf32>
    %15 = vector.broadcast %14 : vector<1x32xf32> to vector<8x32xf32>
    %16 = arith.addf %13, %15 : vector<8x32xf32>
    %cst_12 = arith.constant 0.000000e+00 : f32
    %17 = vector.broadcast %cst_12 : f32 to vector<8x32xf32>
    %18 = arith.cmpf ogt, %16, %17 : vector<8x32xf32>
    %cst_13 = arith.constant 0.00999999977 : f32
    %19 = vector.broadcast %cst_13 : f32 to vector<8x32xf32>
    %20 = arith.mulf %19, %16 : vector<8x32xf32>
    %21 = arith.select %18, %16, %20 : vector<8x32xi1>, vector<8x32xf32>
    %22 = arith.truncf %21 : vector<8x32xf32> to vector<8x32xbf16>
    %c0_14 = arith.constant 0 : index
    %c0_15 = arith.constant 0 : index
    %23 = vector.load %arg6[%c0_14, %c0_15] : memref<32x16xbf16, #tpu.memory_space<vmem>>, vector<32x16xbf16>
    %cst_16 = arith.constant dense<0.000000e+00> : vector<8x16xf32>
    %24 = tpu.matmul %22, %23, %cst_16 {dimension_numbers = #tpu.dot_dimension_numbers<[1], [0], [0], [1], [0, 0, 1, 1], [], []>} : vector<8x32xbf16>, vector<32x16xbf16>, vector<8x16xf32> -> vector<8x16xf32>
    %c0_17 = arith.constant 0 : index
    %c0_18 = arith.constant 0 : index
    %25 = vector.load %arg7[%c0_17, %c0_18] : memref<1x16xf32, #tpu.memory_space<vmem>>, vector<1x16xf32>
    %26 = vector.broadcast %25 : vector<1x16xf32> to vector<8x16xf32>
    %27 = arith.addf %24, %26 : vector<8x16xf32>
    %cst_19 = arith.constant dense<0xFF800000> : vector<8xf32>
    %28 = vector.multi_reduction <maximumf>, %27, %cst_19 [1] : vector<8x16xf32> to vector<8xf32>
    %29 = vector.shape_cast %28 : vector<8xf32> to vector<8x1xf32>
    %30 = vector.broadcast %29 : vector<8x1xf32> to vector<8x16xf32>
    %31 = arith.subf %27, %30 : vector<8x16xf32>
    %32 = math.exp %31 : vector<8x16xf32>
    %cst_20 = arith.constant dense<0.000000e+00> : vector<8xf32>
    %33 = vector.multi_reduction <add>, %32, %cst_20 [1] : vector<8x16xf32> to vector<8xf32>
    %34 = vector.shape_cast %33 : vector<8xf32> to vector<8x1xf32>
    %35 = tpu.reciprocal %34 {approx = true} : vector<8x1xf32> -> vector<8x1xf32>
    %36 = vector.broadcast %35 : vector<8x1xf32> to vector<8x16xf32>
    %37 = arith.mulf %32, %36 : vector<8x16xf32>
    %38 = math.exp %37 : vector<8x16xf32>
    %39 = tpu.iota {dimensions = array<i32: 0>} : vector<16x16xi32>
    %40 = arith.sitofp %39 : vector<16x16xi32> to vector<16x16xf32>
    %41 = tpu.iota {dimensions = array<i32: 1>} : vector<16x16xi32>
    %42 = arith.sitofp %41 : vector<16x16xi32> to vector<16x16xf32>
    %cst_21 = arith.constant 5.000000e-01 : f32
    %43 = vector.broadcast %cst_21 : f32 to vector<16x16xf32>
    %44 = arith.addf %40, %43 : vector<16x16xf32>
    %cst_22 = arith.constant 2.500000e-01 : f32
    %45 = vector.broadcast %cst_22 : f32 to vector<16x16xf32>
    %46 = arith.mulf %44, %45 : vector<16x16xf32>
    %47 = math.floor %46 : vector<16x16xf32>
    %cst_23 = arith.constant 5.000000e-01 : f32
    %48 = vector.broadcast %cst_23 : f32 to vector<16x16xf32>
    %49 = arith.addf %42, %48 : vector<16x16xf32>
    %cst_24 = arith.constant 2.500000e-01 : f32
    %50 = vector.broadcast %cst_24 : f32 to vector<16x16xf32>
    %51 = arith.mulf %49, %50 : vector<16x16xf32>
    %52 = math.floor %51 : vector<16x16xf32>
    %53 = arith.cmpf oeq, %47, %52 : vector<16x16xf32>
    %54 = arith.extui %53 : vector<16x16xi1> to vector<16x16xi32>
    %55 = arith.sitofp %54 : vector<16x16xi32> to vector<16x16xf32>
    %56 = arith.truncf %55 : vector<16x16xf32> to vector<16x16xbf16>
    %57 = arith.truncf %38 : vector<8x16xf32> to vector<8x16xbf16>
    %cst_25 = arith.constant dense<0.000000e+00> : vector<8x16xf32>
    %58 = tpu.matmul %57, %56, %cst_25 {dimension_numbers = #tpu.dot_dimension_numbers<[1], [0], [0], [1], [0, 0, 1, 1], [], []>} : vector<8x16xbf16>, vector<16x16xbf16>, vector<8x16xf32> -> vector<8x16xf32>
    %59 = tpu.reciprocal %58 {approx = true} : vector<8x16xf32> -> vector<8x16xf32>
    %60 = arith.mulf %38, %59 : vector<8x16xf32>
    %c0_26 = arith.constant 0 : index
    %c0_27 = arith.constant 0 : index
    %61 = vector.load %arg8[%c0_26, %c0_27] : memref<8x16xf32, #tpu.memory_space<vmem>>, vector<8x16xf32>
    tpu.vector_store %arg8[%c0_26, %c0_27], %60 {strides = array<i32>} : memref<8x16xf32, #tpu.memory_space<vmem>>, vector<8x16xf32>,
    return
  }
  func.func @transform_0(%arg0: i32) -> (i32, i32) {
    %c0_i32 = arith.constant 0 : i32
    %c0_i32_0 = arith.constant 0 : i32
    return %arg0, %c0_i32 : i32, i32
  }
  func.func @transform_1(%arg0: i32) -> (i32, i32) {
    %c0_i32 = arith.constant 0 : i32
    %c0_i32_0 = arith.constant 0 : i32
    %c0_i32_1 = arith.constant 0 : i32
    return %c0_i32, %c0_i32_0 : i32, i32
  }
  func.func @transform_2(%arg0: i32) -> (i32, i32) {
    %c0_i32 = arith.constant 0 : i32
    %c0_i32_0 = arith.constant 0 : i32
    %c0_i32_1 = arith.constant 0 : i32
    return %c0_i32, %c0_i32_0 : i32, i32
  }
  func.func @transform_3(%arg0: i32) -> (i32, i32) {
    %c0_i32 = arith.constant 0 : i32
    %c0_i32_0 = arith.constant 0 : i32
    %c0_i32_1 = arith.constant 0 : i32
    return %c0_i32, %c0_i32_0 : i32, i32
  }
  func.func @transform_4(%arg0: i32) -> (i32, i32) {
    %c0_i32 = arith.constant 0 : i32
    %c0_i32_0 = arith.constant 0 : i32
    %c0_i32_1 = arith.constant 0 : i32
    return %c0_i32, %c0_i32_0 : i32, i32
  }
  func.func @transform_5(%arg0: i32) -> (i32, i32) {
    %c0_i32 = arith.constant 0 : i32
    %c0_i32_0 = arith.constant 0 : i32
    %c0_i32_1 = arith.constant 0 : i32
    return %c0_i32, %c0_i32_0 : i32, i32
  }
  func.func @transform_6(%arg0: i32) -> (i32, i32) {
    %c0_i32 = arith.constant 0 : i32
    %c0_i32_0 = arith.constant 0 : i32
    %c0_i32_1 = arith.constant 0 : i32
    return %c0_i32, %c0_i32_0 : i32, i32
  }
  func.func @transform_7(%arg0: i32) -> (i32, i32) {
    %c0_i32 = arith.constant 0 : i32
    %c0_i32_0 = arith.constant 0 : i32
    return %arg0, %c0_i32 : i32, i32
  }
}

</mosaic_0001>

<llo_original>
// kernel: tpu_custom_call.1
$region0: #{tpu_custom_call.1}
  #allocation0 [shape = 'u32[]', space=smem, size = 0x4, offset = 0x4, fixed_abs, tag = 'smem constant byte address 0x4 - core index']
  #allocation1 [shape = 'u32[144,128]{1,0:T(1,128)}', space=vmem, size = 0x12000, scoped, tag = 'internal scratch']
  %s0 = inlined_call_operand.hbm [shape: bf16[8,32], index: 0, kind: input, shape index: {}]
  %s1 = inlined_call_operand.vmem [shape: bf16[32,32], index: 1, kind: input, shape index: {}]
  %s2 = inlined_call_operand.vmem [shape: f32[1,32], index: 2, kind: input, shape index: {}]
  %s3 = inlined_call_operand.vmem [shape: bf16[32,32], index: 3, kind: input, shape index: {}]
  %s4 = inlined_call_operand.vmem [shape: f32[1,32], index: 4, kind: input, shape index: {}]
  %s5 = inlined_call_operand.vmem [shape: bf16[32,16], index: 5, kind: input, shape index: {}]
  %s6 = inlined_call_operand.vmem [shape: f32[1,16], index: 6, kind: input, shape index: {}]
  %s7 = inlined_call_operand.hbm [shape: f32[8,16], index: 7, kind: output, shape index: {}]
  %s8 = sld [smem:[#allocation0]]
  $region42: #{tpu_custom_call.1} parent=0
    _
  %s10 = ssub.s32 1, %s8
  %s11 = scalar_select 0, %s10, %s8
  $region1: #{tpu_custom_call.1} parent=0
    #allocation2 [shape = 'u8[2048]{0}', space=vmem, size = 0x800, scoped, tag = 'input window, operand 0, single buffered']
    #allocation3 [shape = 's32[1]{0}', space=sflag, size = 0x4, scoped, tag = 'scoped memory for tpu_custom_call.1']
    #allocation4 [shape = 's32[1]{0}', space=sflag, size = 0x4, scoped, tag = 'scoped memory for tpu_custom_call.1']
    #allocation5 [shape = 'u8[4096]{0}', space=vmem, size = 0x1000, scoped, tag = 'output window, operand 0, single buffered']
    %12 = vsyncpa [#allocation3], 0
    %13 = vsyncpa [#allocation4], 0
    // Predicated region
    $region2: #{tpu_custom_call.1} parent=1 // pred_check
      _
    $region3: #{tpu_custom_call.1} parent=1 // pred_check_branch
      %15 = sbr.rel (0) target = $region5
    $region4: #{tpu_custom_call.1} parent=1 // pred_region
      %s17 = ssub.s32 64, 64
      %18 = vsyncadd [#allocation3], %s17
      %s20 = sshll.u32 [#allocation2], 4
      %s21 = int_to_ptr.vmem [resolvable:$true] %s20
      %23 = dma.hbm_to_vmem [thread:$0]  %s0, 64, %s21, [#allocation3]
    $region5: #{tpu_custom_call.1} parent=1 // pred_fallthru
      _
    // Predicated region
    $region6: #{tpu_custom_call.1} parent=1 // pred_check
      _
    $region7: #{tpu_custom_call.1} parent=1 // pred_check_branch
      %25 = sbr.rel (0) target = $region9
    $region8: #{tpu_custom_call.1} parent=1 // pred_region
      _
    $region9: #{tpu_custom_call.1} parent=1 // pred_fallthru
      _
    // Predicated region
    $region10: #{tpu_custom_call.1} parent=1 // pred_check
      _
    $region11: #{tpu_custom_call.1} parent=1 // pred_check_branch
      %27 = sbr.rel (0) target = $region13
    $region12: #{tpu_custom_call.1} parent=1 // pred_region
      _
    $region13: #{tpu_custom_call.1} parent=1 // pred_fallthru
      _
    // Predicated region
    $region14: #{tpu_custom_call.1} parent=1 // pred_check
      _
    $region15: #{tpu_custom_call.1} parent=1 // pred_check_branch
      %29 = sbr.rel (0) target = $region17
    $region16: #{tpu_custom_call.1} parent=1 // pred_region
      _
    $region17: #{tpu_custom_call.1} parent=1 // pred_fallthru
      _
    // Predicated region
    $region18: #{tpu_custom_call.1} parent=1 // pred_check
      _
    $region19: #{tpu_custom_call.1} parent=1 // pred_check_branch
      %31 = sbr.rel (0) target = $region21
    $region20: #{tpu_custom_call.1} parent=1 // pred_region
      _
    $region21: #{tpu_custom_call.1} parent=1 // pred_fallthru
      _
    // Predicated region
    $region22: #{tpu_custom_call.1} parent=1 // pred_check
      _
    $region23: #{tpu_custom_call.1} parent=1 // pred_check_branch
      %33 = sbr.rel (0) target = $region25
    $region24: #{tpu_custom_call.1} parent=1 // pred_region
      _
    $region25: #{tpu_custom_call.1} parent=1 // pred_fallthru
      _
    // Predicated region
    $region26: #{tpu_custom_call.1} parent=1 // pred_check
      _
    $region27: #{tpu_custom_call.1} parent=1 // pred_check_branch
      %35 = sbr.rel (0) target = $region29
    $region28: #{tpu_custom_call.1} parent=1 // pred_region
      _
    $region29: #{tpu_custom_call.1} parent=1 // pred_fallthru
      _
    // Predicated region
    $region30: #{tpu_custom_call.1} parent=1 // pred_check
      _
    $region31: #{tpu_custom_call.1} parent=1 // pred_check_branch
      %37 = sbr.rel (0) target = $region33
    $region32: #{tpu_custom_call.1} parent=1 // pred_region
      %38 = dma.done [#allocation3], 64
    $region33: #{tpu_custom_call.1} parent=1 // pred_fallthru
      _
    %v40 = vld [vmem:[#allocation2] sm:$0xf]
    %v41 = vld [vmem:[%s1] sm:$0xf]
    %v42 = vld [vmem:[%s1 + $0x4] sm:$0xf]
    %v43 = vld [vmem:[%s1 + $0x8] sm:$0xf]
    %v44 = vld [vmem:[%s1 + $0xc] sm:$0xf]
    %v45 = vld [vmem:[%s2] sm:$0x1]
    %v47 = vlaneseq
    %v48 = vshrl.u32 %v47, 7
    %v49 = vsub.s32 0, %v48
    %v50 = vrot.slane %v45, %v49
    %v56 = vunpack.c.l.b16 %v41
    %v57 = vunpack.c.l.b16 %v42
    %v58 = vunpack.c.l.b16 %v43
    %v59 = vunpack.c.l.b16 %v44
    %v60 = vpack.c.b16 %v57, %v56
    %v61 = vpack.c.b16 %v59, %v58
    %vm64 = vcmask 261120
    %v66 = vsel %vm64, %v40, 0
    %68 = vmatprep.subr.bf16.mxu0 0
    %69 = vmatpush1.bf16.msra.mxu0 %v60
    %70 = vmatprep.subr.bf16.mxu0 0
    %71 = vmatpush1.bf16.msra.mxu0 %v61
    %72 = vmatprep.subr.bf16.mxu0 0
    %73 = vmatpush1.bf16.msra.mxu0 0
    %74 = vmatprep.subr.bf16.mxu0 0
    %75 = vmatpush1.bf16.msra.mxu0 0
    %76 = vmatprep.subr.bf16.mxu0 0
    %77 = vmatpush1.bf16.msra.mxu0 0
    %78 = vmatprep.subr.bf16.mxu0 0
    %79 = vmatpush1.bf16.msra.mxu0 0
    %80 = vmatprep.subr.bf16.mxu0 0
    %81 = vmatpush1.bf16.msra.mxu0 0
    %82 = vmatprep.subr.bf16.mxu0 0
    %83 = vmatpush1.bf16.msra.mxu0 0
    %84 = vmatprep.subr.bf16.mxu0 0
    %85 = vmatpush1.bf16.msra.mxu0 0
    %86 = vmatprep.subr.bf16.mxu0 0
    %87 = vmatpush1.bf16.msra.mxu0 0
    %88 = vmatprep.subr.bf16.mxu0 0
    %89 = vmatpush1.bf16.msra.mxu0 0
    %90 = vmatprep.subr.bf16.mxu0 0
    %91 = vmatpush1.bf16.msra.mxu0 0
    %92 = vmatprep.subr.bf16.mxu0 0
    %93 = vmatpush1.bf16.msra.mxu0 0
    %94 = vmatprep.subr.bf16.mxu0 0
    %95 = vmatpush1.bf16.msra.mxu0 0
    %96 = vmatprep.subr.bf16.mxu0 0
    %97 = vmatpush1.bf16.msra.mxu0 0
    %98 = vmatprep.subr.bf16.mxu0 0
    %99 = vmatpush1.bf16.msra.mxu0 0
    %100 = vmatprep.mubr.bf16.mxu0 0
    %101 = vmatmul.mubr.bf16.gmra.mrb[0].mxu0 %v66
    %v102 = vpop.f32.mrb[0].mxu0
    %v103 = vadd.f32 %v50, %v102
    %v104 = vpop.f32.mrb[0].mxu0
    %v105 = vpop.f32.mrb[0].mxu0
    %v106 = vpop.f32.mrb[0].mxu0
    %107 = vdwg.mxu0
    %vm108 = vcmp.gt.f32.partialorder %v103, 0.0
    %v109 = vmul.f32 %v103, 0.01
    %v110 = vsel %vm108, %v103, %v109
    %v111 = vpack.c.bf16 %v110, %v110
    %v112 = vld [vmem:[%s3] sm:$0xf]
    %v113 = vld [vmem:[%s3 + $0x4] sm:$0xf]
    %v114 = vld [vmem:[%s3 + $0x8] sm:$0xf]
    %v115 = vld [vmem:[%s3 + $0xc] sm:$0xf]
    %v116 = vld [vmem:[%s4] sm:$0x1]
    %v118 = vlaneseq
    %v119 = vshrl.u32 %v118, 7
    %v120 = vsub.s32 0, %v119
    %v121 = vrot.slane %v116, %v120
    %v127 = vunpack.c.l.b16 %v112
    %v128 = vunpack.c.l.b16 %v113
    %v129 = vunpack.c.l.b16 %v114
    %v130 = vunpack.c.l.b16 %v115
    %v131 = vpack.c.b16 %v128, %v127
    %v132 = vpack.c.b16 %v130, %v129
    %v136 = vsel %vm64, %v111, 0
    %138 = vmatprep.subr.bf16.mxu0 0
    %139 = vmatpush1.bf16.msra.mxu0 %v131
    %140 = vmatprep.subr.bf16.mxu0 0
    %141 = vmatpush1.bf16.msra.mxu0 %v132
    %142 = vmatprep.subr.bf16.mxu0 0
    %143 = vmatpush1.bf16.msra.mxu0 0
    %144 = vmatprep.subr.bf16.mxu0 0
    %145 = vmatpush1.bf16.msra.mxu0 0
    %146 = vmatprep.subr.bf16.mxu0 0
    %147 = vmatpush1.bf16.msra.mxu0 0
    %148 = vmatprep.subr.bf16.mxu0 0
    %149 = vmatpush1.bf16.msra.mxu0 0
    %150 = vmatprep.subr.bf16.mxu0 0
    %151 = vmatpush1.bf16.msra.mxu0 0
    %152 = vmatprep.subr.bf16.mxu0 0
    %153 = vmatpush1.bf16.msra.mxu0 0
    %154 = vmatprep.subr.bf16.mxu0 0
    %155 = vmatpush1.bf16.msra.mxu0 0
    %156 = vmatprep.subr.bf16.mxu0 0
    %157 = vmatpush1.bf16.msra.mxu0 0
    %158 = vmatprep.subr.bf16.mxu0 0
    %159 = vmatpush1.bf16.msra.mxu0 0
    %160 = vmatprep.subr.bf16.mxu0 0
    %161 = vmatpush1.bf16.msra.mxu0 0
    %162 = vmatprep.subr.bf16.mxu0 0
    %163 = vmatpush1.bf16.msra.mxu0 0
    %164 = vmatprep.subr.bf16.mxu0 0
    %165 = vmatpush1.bf16.msra.mxu0 0
    %166 = vmatprep.subr.bf16.mxu0 0
    %167 = vmatpush1.bf16.msra.mxu0 0
    %168 = vmatprep.subr.bf16.mxu0 0
    %169 = vmatpush1.bf16.msra.mxu0 0
    %170 = vmatprep.mubr.bf16.mxu0 0
    %171 = vmatmul.mubr.bf16.gmra.mrb[0].mxu0 %v136
    %v172 = vpop.f32.mrb[0].mxu0
    %v173 = vadd.f32 %v121, %v172
    %v174 = vpop.f32.mrb[0].mxu0
    %v175 = vpop.f32.mrb[0].mxu0
    %v176 = vpop.f32.mrb[0].mxu0
    %177 = vdwg.mxu0
    %vm178 = vcmp.gt.f32.partialorder %v173, 0.0
    %v179 = vmul.f32 %v173, 0.01
    %v180 = vsel %vm178, %v173, %v179
    %v181 = vpack.c.bf16 %v180, %v180
    %v182 = vld [vmem:[%s5] sm:$0xf]
    %v183 = vld [vmem:[%s5 + $0x4] sm:$0xf]
    %v184 = vld [vmem:[%s5 + $0x8] sm:$0xf]
    %v185 = vld [vmem:[%s5 + $0xc] sm:$0xf]
    %v186 = vld [vmem:[%s6] sm:$0x1]
    %v188 = vlaneseq
    %v189 = vshrl.u32 %v188, 7
    %v190 = vsub.s32 0, %v189
    %v191 = vrot.slane %v186, %v190
    %v197 = vunpack.c.l.b16 %v182
    %v198 = vunpack.c.l.b16 %v183
    %v199 = vunpack.c.l.b16 %v184
    %v200 = vunpack.c.l.b16 %v185
    %v201 = vpack.c.b16 %v198, %v197
    %v202 = vpack.c.b16 %v200, %v199
    %v206 = vsel %vm64, %v181, 0
    %208 = vmatprep.subr.bf16.mxu0 0
    %209 = vmatpush1.bf16.msra.mxu0 %v201
    %210 = vmatprep.subr.bf16.mxu0 0
    %211 = vmatpush1.bf16.msra.mxu0 %v202
    %212 = vmatprep.subr.bf16.mxu0 0
    %213 = vmatpush1.bf16.msra.mxu0 0
    %214 = vmatprep.subr.bf16.mxu0 0
    %215 = vmatpush1.bf16.msra.mxu0 0
    %216 = vmatprep.subr.bf16.mxu0 0
    %217 = vmatpush1.bf16.msra.mxu0 0
    %218 = vmatprep.subr.bf16.mxu0 0
    %219 = vmatpush1.bf16.msra.mxu0 0
    %220 = vmatprep.subr.bf16.mxu0 0
    %221 = vmatpush1.bf16.msra.mxu0 0
    %222 = vmatprep.subr.bf16.mxu0 0
    %223 = vmatpush1.bf16.msra.mxu0 0
    %224 = vmatprep.subr.bf16.mxu0 0
    %225 = vmatpush1.bf16.msra.mxu0 0
    %226 = vmatprep.subr.bf16.mxu0 0
    %227 = vmatpush1.bf16.msra.mxu0 0
    %228 = vmatprep.subr.bf16.mxu0 0
    %229 = vmatpush1.bf16.msra.mxu0 0
    %230 = vmatprep.subr.bf16.mxu0 0
    %231 = vmatpush1.bf16.msra.mxu0 0
    %232 = vmatprep.subr.bf16.mxu0 0
    %233 = vmatpush1.bf16.msra.mxu0 0
    %234 = vmatprep.subr.bf16.mxu0 0
    %235 = vmatpush1.bf16.msra.mxu0 0
    %236 = vmatprep.subr.bf16.mxu0 0
    %237 = vmatpush1.bf16.msra.mxu0 0
    %238 = vmatprep.subr.bf16.mxu0 0
    %239 = vmatpush1.bf16.msra.mxu0 0
    %240 = vmatprep.mubr.bf16.mxu0 0
    %241 = vmatmul.mubr.bf16.gmra.mrb[0].mxu0 %v206
    %v242 = vpop.f32.mrb[0].mxu0
    %v243 = vadd.f32 %v191, %v242
    %v244 = vpop.f32.mrb[0].mxu0
    %v245 = vpop.f32.mrb[0].mxu0
    %v246 = vpop.f32.mrb[0].mxu0
    %247 = vdwg.mxu0
    %vm248 = vcmask 130048
    %v249 = vsel %vm248, %v243, -inf
    %250 = vmax.xlane.f32.xlu0 %v249
    %v251 = vpop.xlane.xlu0 %250
    %v252 = vsub.f32 %v243, %v251
    %v253 = vmul.f32 %v252, 1.442695
    %v254 = vpow.pop %v253
    %v255 = vsel %vm248, %v254, 0.0
    %256 = vadd.xlane.f32.xlu0 %v255
    %v257 = vpop.xlane.xlu0 %256
    %v258 = vrcp.pop %v257
    %v259 = vmul.f32 %v254, %v258
    %v260 = vmul.f32 %v259, 1.442695
    %v261 = vpow.pop %v260
    %v262 = vlaneseq
    %v263 = vshrl.u32 %v262, 7
    %v264 = vadd.s32 %v263, 8
    %v265 = vcvt.s32.f32 %v263
    %v266 = vcvt.s32.f32 %v264
    %v267 = vlaneseq
    %v268 = vand.u32 %v267, 127
    %v269 = vcvt.s32.f32 %v268
    %v270 = vadd.f32 %v265, 0.5
    %v271 = vadd.f32 %v266, 0.5
    %v272 = vmul.f32 %v270, 0.25
    %v273 = vmul.f32 %v271, 0.25
    %v274 = vfloor.f32 %v272
    %v275 = vfloor.f32 %v273
    %v276 = vadd.f32 %v269, 0.5
    %v277 = vmul.f32 %v276, 0.25
    %v278 = vfloor.f32 %v277
    %vm279 = vcmp.eq.f32.partialorder %v274, %v278
    %vm280 = vcmp.eq.f32.partialorder %v275, %v278
    %v281 = vsel %vm279, 1, 0
    %v282 = vsel %vm280, 1, 0
    %v283 = vcvt.s32.f32 %v281
    %v284 = vcvt.s32.f32 %v282
    %v285 = vpack.c.bf16 %v284, %v283
    %v286 = vpack.c.bf16 %v261, %v261
    %v288 = vsel %vm248, %v286, 0
    %290 = vmatprep.subr.bf16.mxu0 0
    %291 = vmatpush1.bf16.msra.mxu0 %v285
    %292 = vmatprep.subr.bf16.mxu0 0
    %293 = vmatpush1.bf16.msra.mxu0 0
    %294 = vmatprep.subr.bf16.mxu0 0
    %295 = vmatpush1.bf16.msra.mxu0 0
    %296 = vmatprep.subr.bf16.mxu0 0
    %297 = vmatpush1.bf16.msra.mxu0 0
    %298 = vmatprep.subr.bf16.mxu0 0
    %299 = vmatpush1.bf16.msra.mxu0 0
    %300 = vmatprep.subr.bf16.mxu0 0
    %301 = vmatpush1.bf16.msra.mxu0 0
    %302 = vmatprep.subr.bf16.mxu0 0
    %303 = vmatpush1.bf16.msra.mxu0 0
    %304 = vmatprep.subr.bf16.mxu0 0
    %305 = vmatpush1.bf16.msra.mxu0 0
    %306 = vmatprep.subr.bf16.mxu0 0
    %307 = vmatpush1.bf16.msra.mxu0 0
    %308 = vmatprep.subr.bf16.mxu0 0
    %309 = vmatpush1.bf16.msra.mxu0 0
    %310 = vmatprep.subr.bf16.mxu0 0
    %311 = vmatpush1.bf16.msra.mxu0 0
    %312 = vmatprep.subr.bf16.mxu0 0
    %313 = vmatpush1.bf16.msra.mxu0 0
    %314 = vmatprep.subr.bf16.mxu0 0
    %315 = vmatpush1.bf16.msra.mxu0 0
    %316 = vmatprep.subr.bf16.mxu0 0
    %317 = vmatpush1.bf16.msra.mxu0 0
    %318 = vmatprep.subr.bf16.mxu0 0
    %319 = vmatpush1.bf16.msra.mxu0 0
    %320 = vmatprep.subr.bf16.mxu0 0
    %321 = vmatpush1.bf16.msra.mxu0 0
    %322 = vmatprep.mubr.bf16.mxu0 0
    %323 = vmatmul.mubr.bf16.gmra.mrb[0].mxu0 %v288
    %v324 = vpop.f32.mrb[0].mxu0
    %v325 = vadd.f32 0.0, %v324
    %v326 = vpop.f32.mrb[0].mxu0
    %v327 = vpop.f32.mrb[0].mxu0
    %v328 = vpop.f32.mrb[0].mxu0
    %329 = vdwg.mxu0
    %v330 = vrcp.pop %v325
    %v331 = vmul.f32 %v261, %v330
    %332 = vst.msk [vmem:[#allocation5] sm:$0xff] %vm248, %v331
    // Predicated region
    $region34: #{tpu_custom_call.1} parent=1 // pred_check
      _
    $region35: #{tpu_custom_call.1} parent=1 // pred_check_branch
      %334 = sbr.rel (0) target = $region37
    $region36: #{tpu_custom_call.1} parent=1 // pred_region
      %s336 = ssub.s32 128, 128
      %337 = vsyncadd [#allocation4], %s336
      %s339 = sshll.u32 [#allocation5], 4
      %s340 = int_to_ptr.vmem [resolvable:$true] %s339
      %342 = dma.vmem_to_hbm [thread:$0]  %s340, 128, %s7, [#allocation4]
    $region37: #{tpu_custom_call.1} parent=1 // pred_fallthru
      _
    // Predicated region
    $region38: #{tpu_custom_call.1} parent=1 // pred_check
      _
    $region39: #{tpu_custom_call.1} parent=1 // pred_check_branch
      %344 = sbr.rel (0) target = $region41
    $region40: #{tpu_custom_call.1} parent=1 // pred_region
      %345 = dma.done [#allocation4], 128
    $region41: #{tpu_custom_call.1} parent=1 // pred_fallthru
      _
    %346 = vsyncpa [#allocation3], 1
    %347 = vsyncpa [#allocation4], 1

// kernel: tpu_custom_call.1
$region0: #{tpu_custom_call.1}
  #allocation0 [shape = 'u32[]', space=smem, size = 0x4, offset = 0x4, fixed_abs, tag = 'smem constant byte address 0x4 - core index']
  #allocation1 [shape = 'u32[144,128]{1,0:T(1,128)}', space=vmem, size = 0x12000, scoped, tag = 'internal scratch']
  %s0 = inlined_call_operand.hbm [shape: bf16[8,32], index: 0, kind: input, shape index: {}]
  %s1 = inlined_call_operand.vmem [shape: bf16[32,32], index: 1, kind: input, shape index: {}]
  %s2 = inlined_call_operand.vmem [shape: f32[1,32], index: 2, kind: input, shape index: {}]
  %s3 = inlined_call_operand.vmem [shape: bf16[32,32], index: 3, kind: input, shape index: {}]
  %s4 = inlined_call_operand.vmem [shape: f32[1,32], index: 4, kind: input, shape index: {}]
  %s5 = inlined_call_operand.vmem [shape: bf16[32,16], index: 5, kind: input, shape index: {}]
  %s6 = inlined_call_operand.vmem [shape: f32[1,16], index: 6, kind: input, shape index: {}]
  %s7 = inlined_call_operand.hbm [shape: f32[8,16], index: 7, kind: output, shape index: {}]
  %s8 = sld [smem:[#allocation0]]
  $region42: #{tpu_custom_call.1} parent=0
    _
  %s10 = ssub.s32 1, %s8
  %s11 = scalar_select 0, %s10, %s8
  $region1: #{tpu_custom_call.1} parent=0
    #allocation2 [shape = 'u8[2048]{0}', space=vmem, size = 0x800, scoped, tag = 'input window, operand 0, single buffered']
    #allocation3 [shape = 's32[1]{0}', space=sflag, size = 0x4, scoped, tag = 'scoped memory for tpu_custom_call.1']
    #allocation4 [shape = 's32[1]{0}', space=sflag, size = 0x4, scoped, tag = 'scoped memory for tpu_custom_call.1']
    #allocation5 [shape = 'u8[4096]{0}', space=vmem, size = 0x1000, scoped, tag = 'output window, operand 0, single buffered']
    %12 = vsyncpa [#allocation3], 0
    %13 = vsyncpa [#allocation4], 0
    // Predicated region
    $region2: #{tpu_custom_call.1} parent=1 // pred_check
      _
    $region3: #{tpu_custom_call.1} parent=1 // pred_check_branch
      %15 = sbr.rel (0) target = $region5
    $region4: #{tpu_custom_call.1} parent=1 // pred_region
      %s17 = ssub.s32 64, 64
      %18 = vsyncadd [#allocation3], %s17
      %s20 = sshll.u32 [#allocation2], 4
      %s21 = int_to_ptr.vmem [resolvable:$true] %s20
      %23 = dma.hbm_to_vmem [thread:$0]  %s0, 64, %s21, [#allocation3]
    $region5: #{tpu_custom_call.1} parent=1 // pred_fallthru
      _
    // Predicated region
    $region6: #{tpu_custom_call.1} parent=1 // pred_check
      _
    $region7: #{tpu_custom_call.1} parent=1 // pred_check_branch
      %25 = sbr.rel (0) target = $region9
    $region8: #{tpu_custom_call.1} parent=1 // pred_region
      _
    $region9: #{tpu_custom_call.1} parent=1 // pred_fallthru
      _
    // Predicated region
    $region10: #{tpu_custom_call.1} parent=1 // pred_check
      _
    $region11: #{tpu_custom_call.1} parent=1 // pred_check_branch
      %27 = sbr.rel (0) target = $region13
    $region12: #{tpu_custom_call.1} parent=1 // pred_region
      _
    $region13: #{tpu_custom_call.1} parent=1 // pred_fallthru
      _
    // Predicated region
    $region14: #{tpu_custom_call.1} parent=1 // pred_check
      _
    $region15: #{tpu_custom_call.1} parent=1 // pred_check_branch
      %29 = sbr.rel (0) target = $region17
    $region16: #{tpu_custom_call.1} parent=1 // pred_region
      _
    $region17: #{tpu_custom_call.1} parent=1 // pred_fallthru
      _
    // Predicated region
    $region18: #{tpu_custom_call.1} parent=1 // pred_check
      _
    $region19: #{tpu_custom_call.1} parent=1 // pred_check_branch
      %31 = sbr.rel (0) target = $region21
    $region20: #{tpu_custom_call.1} parent=1 // pred_region
      _
    $region21: #{tpu_custom_call.1} parent=1 // pred_fallthru
      _
    // Predicated region
    $region22: #{tpu_custom_call.1} parent=1 // pred_check
      _
    $region23: #{tpu_custom_call.1} parent=1 // pred_check_branch
      %33 = sbr.rel (0) target = $region25
    $region24: #{tpu_custom_call.1} parent=1 // pred_region
      _
    $region25: #{tpu_custom_call.1} parent=1 // pred_fallthru
      _
    // Predicated region
    $region26: #{tpu_custom_call.1} parent=1 // pred_check
      _
    $region27: #{tpu_custom_call.1} parent=1 // pred_check_branch
      %35 = sbr.rel (0) target = $region29
    $region28: #{tpu_custom_call.1} parent=1 // pred_region
      _
    $region29: #{tpu_custom_call.1} parent=1 // pred_fallthru
      _
    // Predicated region
    $region30: #{tpu_custom_call.1} parent=1 // pred_check
      _
    $region31: #{tpu_custom_call.1} parent=1 // pred_check_branch
      %37 = sbr.rel (0) target = $region33
    $region32: #{tpu_custom_call.1} parent=1 // pred_region
      %38 = dma.done [#allocation3], 64
    $region33: #{tpu_custom_call.1} parent=1 // pred_fallthru
      _
    %v40 = vld [vmem:[#allocation2] sm:$0xf]
    %v41 = vld [vmem:[%s1] sm:$0xf]
    %v42 = vld [vmem:[%s1 + $0x4] sm:$0xf]
    %v43 = vld [vmem:[%s1 + $0x8] sm:$0xf]
    %v44 = vld [vmem:[%s1 + $0xc] sm:$0xf]
    %v45 = vld [vmem:[%s2] sm:$0x1]
    %v47 = vlaneseq
    %v48 = vshrl.u32 %v47, 7
    %v49 = vsub.s32 0, %v48
    %v50 = vrot.slane %v45, %v49
    %v56 = vunpack.c.l.b16 %v41
    %v57 = vunpack.c.l.b16 %v42
    %v58 = vunpack.c.l.b16 %v43
    %v59 = vunpack.c.l.b16 %v44
    %v60 = vpack.c.b16 %v57, %v56
    %v61 = vpack.c.b16 %v59, %v58
    %vm64 = vcmask 261120
    %v66 = vsel %vm64, %v40, 0
    %68 = vmatprep.subr.bf16.mxu0 0
    %69 = vmatpush1.bf16.msra.mxu0 %v60
    %70 = vmatprep.subr.bf16.mxu0 0
    %71 = vmatpush1.bf16.msra.mxu0 %v61
    %72 = vmatprep.subr.bf16.mxu0 0
    %73 = vmatpush1.bf16.msra.mxu0 0
    %74 = vmatprep.subr.bf16.mxu0 0
    %75 = vmatpush1.bf16.msra.mxu0 0
    %76 = vmatprep.subr.bf16.mxu0 0
    %77 = vmatpush1.bf16.msra.mxu0 0
    %78 = vmatprep.subr.bf16.mxu0 0
    %79 = vmatpush1.bf16.msra.mxu0 0
    %80 = vmatprep.subr.bf16.mxu0 0
    %81 = vmatpush1.bf16.msra.mxu0 0
    %82 = vmatprep.subr.bf16.mxu0 0
    %83 = vmatpush1.bf16.msra.mxu0 0
    %84 = vmatprep.subr.bf16.mxu0 0
    %85 = vmatpush1.bf16.msra.mxu0 0
    %86 = vmatprep.subr.bf16.mxu0 0
    %87 = vmatpush1.bf16.msra.mxu0 0
    %88 = vmatprep.subr.bf16.mxu0 0
    %89 = vmatpush1.bf16.msra.mxu0 0
    %90 = vmatprep.subr.bf16.mxu0 0
    %91 = vmatpush1.bf16.msra.mxu0 0
    %92 = vmatprep.subr.bf16.mxu0 0
    %93 = vmatpush1.bf16.msra.mxu0 0
    %94 = vmatprep.subr.bf16.mxu0 0
    %95 = vmatpush1.bf16.msra.mxu0 0
    %96 = vmatprep.subr.bf16.mxu0 0
    %97 = vmatpush1.bf16.msra.mxu0 0
    %98 = vmatprep.subr.bf16.mxu0 0
    %99 = vmatpush1.bf16.msra.mxu0 0
    %100 = vmatprep.mubr.bf16.mxu0 0
    %101 = vmatmul.mubr.bf16.gmra.mrb[0].mxu0 %v66
    %v102 = vpop.f32.mrb[0].mxu0
    %v103 = vadd.f32 %v50, %v102
    %v104 = vpop.f32.mrb[0].mxu0
    %v105 = vpop.f32.mrb[0].mxu0
    %v106 = vpop.f32.mrb[0].mxu0
    %107 = vdwg.mxu0
    %vm108 = vcmp.gt.f32.partialorder %v103, 0.0
    %v109 = vmul.f32 %v103, 0.01
    %v110 = vsel %vm108, %v103, %v109
    %v111 = vpack.c.bf16 %v110, %v110
    %v112 = vld [vmem:[%s3] sm:$0xf]
    %v113 = vld [vmem:[%s3 + $0x4] sm:$0xf]
    %v114 = vld [vmem:[%s3 + $0x8] sm:$0xf]
    %v115 = vld [vmem:[%s3 + $0xc] sm:$0xf]
    %v116 = vld [vmem:[%s4] sm:$0x1]
    %v118 = vlaneseq
    %v119 = vshrl.u32 %v118, 7
    %v120 = vsub.s32 0, %v119
    %v121 = vrot.slane %v116, %v120
    %v127 = vunpack.c.l.b16 %v112
    %v128 = vunpack.c.l.b16 %v113
    %v129 = vunpack.c.l.b16 %v114
    %v130 = vunpack.c.l.b16 %v115
    %v131 = vpack.c.b16 %v128, %v127
    %v132 = vpack.c.b16 %v130, %v129
    %v136 = vsel %vm64, %v111, 0
    %138 = vmatprep.subr.bf16.mxu0 0
    %139 = vmatpush1.bf16.msra.mxu0 %v131
    %140 = vmatprep.subr.bf16.mxu0 0
    %141 = vmatpush1.bf16.msra.mxu0 %v132
    %142 = vmatprep.subr.bf16.mxu0 0
    %143 = vmatpush1.bf16.msra.mxu0 0
    %144 = vmatprep.subr.bf16.mxu0 0
    %145 = vmatpush1.bf16.msra.mxu0 0
    %146 = vmatprep.subr.bf16.mxu0 0
    %147 = vmatpush1.bf16.msra.mxu0 0
    %148 = vmatprep.subr.bf16.mxu0 0
    %149 = vmatpush1.bf16.msra.mxu0 0
    %150 = vmatprep.subr.bf16.mxu0 0
    %151 = vmatpush1.bf16.msra.mxu0 0
    %152 = vmatprep.subr.bf16.mxu0 0
    %153 = vmatpush1.bf16.msra.mxu0 0
    %154 = vmatprep.subr.bf16.mxu0 0
    %155 = vmatpush1.bf16.msra.mxu0 0
    %156 = vmatprep.subr.bf16.mxu0 0
    %157 = vmatpush1.bf16.msra.mxu0 0
    %158 = vmatprep.subr.bf16.mxu0 0
    %159 = vmatpush1.bf16.msra.mxu0 0
    %160 = vmatprep.subr.bf16.mxu0 0
    %161 = vmatpush1.bf16.msra.mxu0 0
    %162 = vmatprep.subr.bf16.mxu0 0
    %163 = vmatpush1.bf16.msra.mxu0 0
    %164 = vmatprep.subr.bf16.mxu0 0
    %165 = vmatpush1.bf16.msra.mxu0 0
    %166 = vmatprep.subr.bf16.mxu0 0
    %167 = vmatpush1.bf16.msra.mxu0 0
    %168 = vmatprep.subr.bf16.mxu0 0
    %169 = vmatpush1.bf16.msra.mxu0 0
    %170 = vmatprep.mubr.bf16.mxu0 0
    %171 = vmatmul.mubr.bf16.gmra.mrb[0].mxu0 %v136
    %v172 = vpop.f32.mrb[0].mxu0
    %v173 = vadd.f32 %v121, %v172
    %v174 = vpop.f32.mrb[0].mxu0
    %v175 = vpop.f32.mrb[0].mxu0
    %v176 = vpop.f32.mrb[0].mxu0
    %177 = vdwg.mxu0
    %vm178 = vcmp.gt.f32.partialorder %v173, 0.0
    %v179 = vmul.f32 %v173, 0.01
    %v180 = vsel %vm178, %v173, %v179
    %v181 = vpack.c.bf16 %v180, %v180
    %v182 = vld [vmem:[%s5] sm:$0xf]
    %v183 = vld [vmem:[%s5 + $0x4] sm:$0xf]
    %v184 = vld [vmem:[%s5 + $0x8] sm:$0xf]
    %v185 = vld [vmem:[%s5 + $0xc] sm:$0xf]
    %v186 = vld [vmem:[%s6] sm:$0x1]
    %v188 = vlaneseq
    %v189 = vshrl.u32 %v188, 7
    %v190 = vsub.s32 0, %v189
    %v191 = vrot.slane %v186, %v190
    %v197 = vunpack.c.l.b16 %v182
    %v198 = vunpack.c.l.b16 %v183
    %v199 = vunpack.c.l.b16 %v184
    %v200 = vunpack.c.l.b16 %v185
    %v201 = vpack.c.b16 %v198, %v197
    %v202 = vpack.c.b16 %v200, %v199
    %v206 = vsel %vm64, %v181, 0
    %208 = vmatprep.subr.bf16.mxu0 0
    %209 = vmatpush1.bf16.msra.mxu0 %v201
    %210 = vmatprep.subr.bf16.mxu0 0
    %211 = vmatpush1.bf16.msra.mxu0 %v202
    %212 = vmatprep.subr.bf16.mxu0 0
    %213 = vmatpush1.bf16.msra.mxu0 0
    %214 = vmatprep.subr.bf16.mxu0 0
    %215 = vmatpush1.bf16.msra.mxu0 0
    %216 = vmatprep.subr.bf16.mxu0 0
    %217 = vmatpush1.bf16.msra.mxu0 0
    %218 = vmatprep.subr.bf16.mxu0 0
    %219 = vmatpush1.bf16.msra.mxu0 0
    %220 = vmatprep.subr.bf16.mxu0 0
    %221 = vmatpush1.bf16.msra.mxu0 0
    %222 = vmatprep.subr.bf16.mxu0 0
    %223 = vmatpush1.bf16.msra.mxu0 0
    %224 = vmatprep.subr.bf16.mxu0 0
    %225 = vmatpush1.bf16.msra.mxu0 0
    %226 = vmatprep.subr.bf16.mxu0 0
    %227 = vmatpush1.bf16.msra.mxu0 0
    %228 = vmatprep.subr.bf16.mxu0 0
    %229 = vmatpush1.bf16.msra.mxu0 0
    %230 = vmatprep.subr.bf16.mxu0 0
    %231 = vmatpush1.bf16.msra.mxu0 0
    %232 = vmatprep.subr.bf16.mxu0 0
    %233 = vmatpush1.bf16.msra.mxu0 0
    %234 = vmatprep.subr.bf16.mxu0 0
    %235 = vmatpush1.bf16.msra.mxu0 0
    %236 = vmatprep.subr.bf16.mxu0 0
    %237 = vmatpush1.bf16.msra.mxu0 0
    %238 = vmatprep.subr.bf16.mxu0 0
    %239 = vmatpush1.bf16.msra.mxu0 0
    %240 = vmatprep.mubr.bf16.mxu0 0
    %241 = vmatmul.mubr.bf16.gmra.mrb[0].mxu0 %v206
    %v242 = vpop.f32.mrb[0].mxu0
    %v243 = vadd.f32 %v191, %v242
    %v244 = vpop.f32.mrb[0].mxu0
    %v245 = vpop.f32.mrb[0].mxu0
    %v246 = vpop.f32.mrb[0].mxu0
    %247 = vdwg.mxu0
    %vm248 = vcmask 130048
    %v249 = vsel %vm248, %v243, -inf
    %250 = vmax.xlane.f32.xlu0 %v249
    %v251 = vpop.xlane.xlu0 %250
    %v252 = vsub.f32 %v243, %v251
    %v253 = vmul.f32 %v252, 1.442695
    %v254 = vpow.pop %v253
    %v255 = vsel %vm248, %v254, 0.0
    %256 = vadd.xlane.f32.xlu0 %v255
    %v257 = vpop.xlane.xlu0 %256
    %v258 = vrcp.pop %v257
    %v259 = vmul.f32 %v254, %v258
    %v260 = vmul.f32 %v259, 1.442695
    %v261 = vpow.pop %v260
    %v262 = vlaneseq
    %v263 = vshrl.u32 %v262, 7
    %v264 = vadd.s32 %v263, 8
    %v265 = vcvt.s32.f32 %v263
    %v266 = vcvt.s32.f32 %v264
    %v267 = vlaneseq
    %v268 = vand.u32 %v267, 127
    %v269 = vcvt.s32.f32 %v268
    %v270 = vadd.f32 %v265, 0.5
    %v271 = vadd.f32 %v266, 0.5
    %v272 = vmul.f32 %v270, 0.25
    %v273 = vmul.f32 %v271, 0.25
    %v274 = vfloor.f32 %v272
    %v275 = vfloor.f32 %v273
    %v276 = vadd.f32 %v269, 0.5
    %v277 = vmul.f32 %v276, 0.25
    %v278 = vfloor.f32 %v277
    %vm279 = vcmp.eq.f32.partialorder %v274, %v278
    %vm280 = vcmp.eq.f32.partialorder %v275, %v278
    %v281 = vsel %vm279, 1, 0
    %v282 = vsel %vm280, 1, 0
    %v283 = vcvt.s32.f32 %v281
    %v284 = vcvt.s32.f32 %v282
    %v285 = vpack.c.bf16 %v284, %v283
    %v286 = vpack.c.bf16 %v261, %v261
    %v288 = vsel %vm248, %v286, 0
    %290 = vmatprep.subr.bf16.mxu0 0
    %291 = vmatpush1.bf16.msra.mxu0 %v285
    %292 = vmatprep.subr.bf16.mxu0 0
    %293 = vmatpush1.bf16.msra.mxu0 0
    %294 = vmatprep.subr.bf16.mxu0 0
    %295 = vmatpush1.bf16.msra.mxu0 0
    %296 = vmatprep.subr.bf16.mxu0 0
    %297 = vmatpush1.bf16.msra.mxu0 0
    %298 = vmatprep.subr.bf16.mxu0 0
    %299 = vmatpush1.bf16.msra.mxu0 0
    %300 = vmatprep.subr.bf16.mxu0 0
    %301 = vmatpush1.bf16.msra.mxu0 0
    %302 = vmatprep.subr.bf16.mxu0 0
    %303 = vmatpush1.bf16.msra.mxu0 0
    %304 = vmatprep.subr.bf16.mxu0 0
    %305 = vmatpush1.bf16.msra.mxu0 0
    %306 = vmatprep.subr.bf16.mxu0 0
    %307 = vmatpush1.bf16.msra.mxu0 0
    %308 = vmatprep.subr.bf16.mxu0 0
    %309 = vmatpush1.bf16.msra.mxu0 0
    %310 = vmatprep.subr.bf16.mxu0 0
    %311 = vmatpush1.bf16.msra.mxu0 0
    %312 = vmatprep.subr.bf16.mxu0 0
    %313 = vmatpush1.bf16.msra.mxu0 0
    %314 = vmatprep.subr.bf16.mxu0 0
    %315 = vmatpush1.bf16.msra.mxu0 0
    %316 = vmatprep.subr.bf16.mxu0 0
    %317 = vmatpush1.bf16.msra.mxu0 0
    %318 = vmatprep.subr.bf16.mxu0 0
    %319 = vmatpush1.bf16.msra.mxu0 0
    %320 = vmatprep.subr.bf16.mxu0 0
    %321 = vmatpush1.bf16.msra.mxu0 0
    %322 = vmatprep.mubr.bf16.mxu0 0
    %323 = vmatmul.mubr.bf16.gmra.mrb[0].mxu0 %v288
    %v324 = vpop.f32.mrb[0].mxu0
    %v325 = vadd.f32 0.0, %v324
    %v326 = vpop.f32.mrb[0].mxu0
    %v327 = vpop.f32.mrb[0].mxu0
    %v328 = vpop.f32.mrb[0].mxu0
    %329 = vdwg.mxu0
    %v330 = vrcp.pop %v325
    %v331 = vmul.f32 %v261, %v330
    %332 = vst.msk [vmem:[#allocation5] sm:$0xff] %vm248, %v331
    // Predicated region
    $region34: #{tpu_custom_call.1} parent=1 // pred_check
      _
    $region35: #{tpu_custom_call.1} parent=1 // pred_check_branch
      %334 = sbr.rel (0) target = $region37
    $region36: #{tpu_custom_call.1} parent=1 // pred_region
      %s336 = ssub.s32 128, 128
      %337 = vsyncadd [#allocation4], %s336
      %s339 = sshll.u32 [#allocation5], 4
      %s340 = int_to_ptr.vmem [resolvable:$true] %s339
      %342 = dma.vmem_to_hbm [thread:$0]  %s340, 128, %s7, [#allocation4]
    $region37: #{tpu_custom_call.1} parent=1 // pred_fallthru
      _
    // Predicated region
    $region38: #{tpu_custom_call.1} parent=1 // pred_check
      _
    $region39: #{tpu_custom_call.1} parent=1 // pred_check_branch
      %344 = sbr.rel (0) target = $region41
    $region40: #{tpu_custom_call.1} parent=1 // pred_region
      %345 = dma.done [#allocation4], 128
    $region41: #{tpu_custom_call.1} parent=1 // pred_fallthru
      _
    %346 = vsyncpa [#allocation3], 1
    %347 = vsyncpa [#allocation4], 1

</llo_original>
